<compile_context>
chip_gen: v7x
topology: tpu7x:2x2x1
jax: 0.10.0
libtpu: 0.0.40
codegen_flags: <defaults>
</compile_context>

<pallas_src>
import jax
import jax.numpy as jnp
from jax.experimental import pallas as pl
from jax.experimental.pallas import tpu as pltpu


def _round_up(x, m):
    return (x + m - 1) // m * m


def _cate_encoder_kernel(idx_ref, lut_ref, b_ref, o_ref):
    """Computes relu(LUT[idx] + b) for one tile of TILE_M rows.

    The gather is expressed as one_hot(idx) @ LUT on the MXU: exact 0/1
    multipliers with f32 accumulation, so the result is an exact f32 row
    selection (bit-parity with gather-then-Linear in f32).
    """
    idx = idx_ref[...]                                     # (TM, 1) int32
    tm = idx.shape[0]
    v_pad = lut_ref.shape[0]

    # One-hot on the VPU (cheap: TM x V_pad compares), matmul on the MXU.
    cols = jax.lax.broadcasted_iota(jnp.int32, (tm, v_pad), 1)
    onehot = (cols == idx).astype(jnp.float32)             # (TM, V_pad)
    acc = jnp.dot(onehot, lut_ref[...],
                  preferred_element_type=jnp.float32)      # (TM, O)

    # Dropout is the identity at inference.
    # TODO(synk): training-mode dropout would use pltpu.prng_seed/prng_random_bits.

    acc = acc + b_ref[...]                                 # (1, O) broadcast, f32
    o_ref[...] = jnp.maximum(acc, 0.0).astype(o_ref.dtype)


def prepare_cate_encoder_params(emb_table, w, b):
    """One-time weight prep (hoisted out of the forward path).

    emb_table: (V, E) f32 embedding weights
    w:         (E, O) f32  (= nn.Linear.weight.T)
    b:         (O,)   f32
    returns:   lut (V_pad, O) f32, bias (1, O) f32
    """
    V, E = emb_table.shape
    O = w.shape[1]
    v_pad = _round_up(V, 8)  # sublane multiple; last dims use full-dim exemption

    # Exact fusion: relu(emb[idx] @ W + b) == relu((emb @ W)[idx] + b).
    lut = jnp.dot(emb_table, w, precision=jax.lax.Precision.HIGHEST)   # (V, O)
    lut = jnp.pad(lut, ((0, v_pad - V), (0, 0)))                       # (V_pad, O)

    # Keep the resident-LUT strategy honest against v7x's 32 MiB scoped VMEM.
    assert lut.size * 4 < 8 * 1024 * 1024, (
        "Vocabulary too large for a VMEM-resident LUT; switch to a DMA row "
        "gather (memory_space=pl.ANY + make_async_copy).")

    b2d = jnp.asarray(b, jnp.float32).reshape(1, O)
    return lut, b2d


def cate_encoder_forward(x_idx, mask, lut, bias, *, tile_m=1024):
    """JAX/Pallas equivalent of CateEncoder.forward (eval mode).

    x_idx: (B, S) int32 category ids
    mask:  unused (signature parity with the PyTorch module, which ignores it)
    lut:   (V_pad, O) f32 from prepare_cate_encoder_params
    bias:  (1, O)     f32 from prepare_cate_encoder_params
    returns: (B, S, O) f32
    """
    del mask  # the reference forward pass never uses it
    B, S = x_idx.shape
    v_pad, O = lut.shape
    M = B * S

    # Row tiling: TM rows per grid step (multiple of 8), capped at tile_m.
    tm = min(tile_m, _round_up(M, 8))
    m_pad = _round_up(M, tm)

    idx = x_idx.reshape(-1).astype(jnp.int32)
    if m_pad != M:
        # Padded rows (id 0) do real but discarded work; sliced off below.
        # Note: ids in [V, V_pad) hit zero-padded LUT rows -> relu(b), not an
        # error like nn.Embedding would raise.
        idx = jnp.pad(idx, (0, m_pad - M))
    idx = idx.reshape(m_pad, 1)

    cost = pl.CostEstimate(
        flops=2 * m_pad * v_pad * O,
        transcendentals=0,
        bytes_accessed=(4 * m_pad            # indices
                        + 4 * v_pad * O      # resident LUT (read once)
                        + 4 * O              # bias
                        + 4 * m_pad * O))    # output

    out = pl.pallas_call(
        _cate_encoder_kernel,
        out_shape=jax.ShapeDtypeStruct((m_pad, O), jnp.float32),
        grid=(m_pad // tm,),
        in_specs=[
            pl.BlockSpec((tm, 1), lambda i: (i, 0)),        # per-tile ids
            pl.BlockSpec((v_pad, O), lambda i: (0, 0)),     # resident fused LUT
            pl.BlockSpec((1, O), lambda i: (0, 0)),         # resident bias
        ],
        out_specs=pl.BlockSpec((tm, O), lambda i: (i, 0)),  # true-O lanes (no pad)
        compiler_params=pltpu.CompilerParams(
            dimension_semantics=("parallel",),
        ),
        cost_estimate=cost,
    )(idx, lut, bias)

    if m_pad != M:
        out = out[:M]
    return out.reshape(B, S, O)


if __name__ == "__main__":
    # Small shapes consistent with the module's forward pass.
    B, S = 2, 8          # batch, number of category tokens
    V = 50               # category vocabulary size
    E = 32               # cate_emb_dim
    O = 64               # out_dim

    key = jax.random.PRNGKey(0)
    k_emb, k_w, k_b, k_x = jax.random.split(key, 4)

    emb_table = jax.random.normal(k_emb, (V, E), dtype=jnp.float32) * 0.1
    # nn.Linear(cate_emb_dim, out_dim): weight (O, E), bias (O,).
    # We store w as (E, O) = weight.T so O lands on the lane axis.
    w = jax.random.normal(k_w, (E, O), dtype=jnp.float32) * 0.1
    b = jax.random.normal(k_b, (O,), dtype=jnp.float32) * 0.1

    x_idx = jax.random.randint(k_x, (B, S), 0, V, dtype=jnp.int32)
    mask = jnp.ones((B, S), dtype=jnp.float32)  # unused, parity with PyTorch

    # One-time weight preparation (hoisted out of the forward path).
    lut, bias = prepare_cate_encoder_params(emb_table, w, b)

    out = cate_encoder_forward(x_idx, mask, lut, bias)
    out = jax.block_until_ready(out)

    # Reference check in plain JAX (exact gather + f32 matmul).
    ref = jnp.maximum(
        jnp.dot(jnp.take(emb_table, x_idx, axis=0), w,
                precision=jax.lax.Precision.HIGHEST) + b, 0.0)
    assert out.shape == (B, S, O)
    # The fused-LUT kernel is an exact f32 row selection, so the tolerance is
    # tight (only f32 matmul accumulation-order noise remains).
    assert jnp.allclose(out, ref, atol=1e-5, rtol=1e-5), float(
        jnp.max(jnp.abs(out - ref)))

    print("KERNEL_OK")
</pallas_src>

<mosaic_0001>
module attributes {stable_mosaic.version = 11 : i64} {
  func.func @_cate_encoder_kernel(%arg0: i32, %arg1: memref<16x1xi32, #tpu.memory_space<vmem>>, %arg2: memref<56x64xf32, #tpu.memory_space<vmem>>, %arg3: memref<1x64xf32, #tpu.memory_space<vmem>>, %arg4: memref<16x64xf32, #tpu.memory_space<vmem>>) attributes {dimension_semantics = [#tpu.dimension_semantics<parallel>], iteration_bounds = array<i64: 1>, scalar_prefetch = 0 : i64, scratch_operands = 0 : i64, tpu.core_type = #tpu.core_type<tc>, window_params = [{transform_indices = @transform_0, window_bounds = array<i64: 16, 1>}, {pipeline_mode = #tpu.pipeline_mode<synchronous>, transform_indices = @transform_1, window_bounds = array<i64: 56, 64>}, {pipeline_mode = #tpu.pipeline_mode<synchronous>, transform_indices = @transform_2, window_bounds = array<i64: 1, 64>}, {transform_indices = @transform_3, window_bounds = array<i64: 16, 64>}]} {
    %c0 = arith.constant 0 : index
    %c0_0 = arith.constant 0 : index
    %0 = vector.load %arg1[%c0, %c0_0] : memref<16x1xi32, #tpu.memory_space<vmem>>, vector<16x1xi32>
    %1 = tpu.iota {dimensions = array<i32: 1>} : vector<16x56xi32>
    %2 = vector.broadcast %0 : vector<16x1xi32> to vector<16x56xi32>
    %3 = arith.cmpi eq, %1, %2 : vector<16x56xi32>
    %4 = arith.extui %3 : vector<16x56xi1> to vector<16x56xi32>
    %5 = arith.sitofp %4 : vector<16x56xi32> to vector<16x56xf32>
    %c0_1 = arith.constant 0 : index
    %c0_2 = arith.constant 0 : index
    %6 = vector.load %arg2[%c0_1, %c0_2] : memref<56x64xf32, #tpu.memory_space<vmem>>, vector<56x64xf32>
    %cst = arith.constant dense<0.000000e+00> : vector<16x64xf32>
    %7 = tpu.matmul %5, %6, %cst {dimension_numbers = #tpu.dot_dimension_numbers<[1], [0], [0], [1], [0, 0, 1, 1], [], []>} : vector<16x56xf32>, vector<56x64xf32>, vector<16x64xf32> -> vector<16x64xf32>
    %c0_3 = arith.constant 0 : index
    %c0_4 = arith.constant 0 : index
    %8 = vector.load %arg3[%c0_3, %c0_4] : memref<1x64xf32, #tpu.memory_space<vmem>>, vector<1x64xf32>
    %9 = vector.broadcast %8 : vector<1x64xf32> to vector<16x64xf32>
    %10 = arith.addf %7, %9 : vector<16x64xf32>
    %cst_5 = arith.constant 0.000000e+00 : f32
    %11 = vector.broadcast %cst_5 : f32 to vector<16x64xf32>
    %12 = arith.maximumf %10, %11 : vector<16x64xf32>
    %c0_6 = arith.constant 0 : index
    %c0_7 = arith.constant 0 : index
    %13 = vector.load %arg4[%c0_6, %c0_7] : memref<16x64xf32, #tpu.memory_space<vmem>>, vector<16x64xf32>
    tpu.vector_store %arg4[%c0_6, %c0_7], %12 {strides = array<i32>} : memref<16x64xf32, #tpu.memory_space<vmem>>, vector<16x64xf32>,
    return
  }
  func.func @transform_0(%arg0: i32) -> (i32, i32) {
    %c0_i32 = arith.constant 0 : i32
    %c0_i32_0 = arith.constant 0 : i32
    return %arg0, %c0_i32 : i32, i32
  }
  func.func @transform_1(%arg0: i32) -> (i32, i32) {
    %c0_i32 = arith.constant 0 : i32
    %c0_i32_0 = arith.constant 0 : i32
    %c0_i32_1 = arith.constant 0 : i32
    return %c0_i32, %c0_i32_0 : i32, i32
  }
  func.func @transform_2(%arg0: i32) -> (i32, i32) {
    %c0_i32 = arith.constant 0 : i32
    %c0_i32_0 = arith.constant 0 : i32
    %c0_i32_1 = arith.constant 0 : i32
    return %c0_i32, %c0_i32_0 : i32, i32
  }
  func.func @transform_3(%arg0: i32) -> (i32, i32) {
    %c0_i32 = arith.constant 0 : i32
    %c0_i32_0 = arith.constant 0 : i32
    return %arg0, %c0_i32 : i32, i32
  }
}

</mosaic_0001>

<llo_original>
// kernel: tpu_custom_call.1
$region0: #{tpu_custom_call.1}
  #allocation0 [shape = 'u32[]', space=smem, size = 0x4, offset = 0x4, fixed_abs, tag = 'smem constant byte address 0x4 - core index']
  #allocation1 [shape = 'u32[144,128]{1,0:T(1,128)}', space=vmem, size = 0x12000, scoped, tag = 'internal scratch']
  %s0 = inlined_call_operand.vmem [shape: s32[16,1], index: 0, kind: input, shape index: {}]
  %s1 = inlined_call_operand.hbm [shape: f32[56,64], index: 1, kind: input, shape index: {}]
  %s2 = inlined_call_operand.vmem [shape: f32[1,64], index: 2, kind: input, shape index: {}]
  %s3 = inlined_call_operand.hbm [shape: f32[16,64], index: 3, kind: output, shape index: {}]
  %s4 = sld [smem:[#allocation0]]
  $region26: #{tpu_custom_call.1} parent=0
    _
  %s6 = ssub.s32 1, %s4
  %s7 = scalar_select 0, %s6, %s4
  $region1: #{tpu_custom_call.1} parent=0
    #allocation2 [shape = 'u8[28672]{0}', space=vmem, size = 0x7000, scoped, tag = 'input window, operand 1, single buffered']
    #allocation3 [shape = 's32[1]{0}', space=sflag, size = 0x4, scoped, tag = 'scoped memory for tpu_custom_call.1']
    #allocation4 [shape = 's32[1]{0}', space=sflag, size = 0x4, scoped, tag = 'scoped memory for tpu_custom_call.1']
    #allocation5 [shape = 'u8[8192]{0}', space=vmem, size = 0x2000, scoped, tag = 'output window, operand 0, single buffered']
    %8 = vsyncpa [#allocation3], 0
    %9 = vsyncpa [#allocation4], 0
    // Predicated region
    $region2: #{tpu_custom_call.1} parent=1 // pred_check
      _
    $region3: #{tpu_custom_call.1} parent=1 // pred_check_branch
      %11 = sbr.rel (0) target = $region5
    $region4: #{tpu_custom_call.1} parent=1 // pred_region
      _
    $region5: #{tpu_custom_call.1} parent=1 // pred_fallthru
      _
    // Predicated region
    $region6: #{tpu_custom_call.1} parent=1 // pred_check
      _
    $region7: #{tpu_custom_call.1} parent=1 // pred_check_branch
      %13 = sbr.rel (0) target = $region9
    $region8: #{tpu_custom_call.1} parent=1 // pred_region
      %s15 = ssub.s32 896, 896
      %16 = vsyncadd [#allocation3], %s15
      %s17 = sshll.u32 [#allocation2], 4
      %s18 = int_to_ptr.vmem [resolvable:$true] %s17
      %23 = dma.hbm_to_vmem [thread:$0]  %s1, 896, %s18, [#allocation3], 128, 128, 8
    $region9: #{tpu_custom_call.1} parent=1 // pred_fallthru
      _
    // Predicated region
    $region10: #{tpu_custom_call.1} parent=1 // pred_check
      _
    $region11: #{tpu_custom_call.1} parent=1 // pred_check_branch
      %25 = sbr.rel (0) target = $region13
    $region12: #{tpu_custom_call.1} parent=1 // pred_region
      _
    $region13: #{tpu_custom_call.1} parent=1 // pred_fallthru
      _
    // Predicated region
    $region14: #{tpu_custom_call.1} parent=1 // pred_check
      _
    $region15: #{tpu_custom_call.1} parent=1 // pred_check_branch
      %27 = sbr.rel (0) target = $region17
    $region16: #{tpu_custom_call.1} parent=1 // pred_region
      %28 = dma.done [#allocation3], 896
    $region17: #{tpu_custom_call.1} parent=1 // pred_fallthru
      _
    %v29 = vld [vmem:[%s0] sm:$0xff]
    %v30 = vld [vmem:[%s0 + $0x8] sm:$0xff]
    %v31 = vlaneseq
    %v32 = vand.u32 %v31, 127
    %33 = vset.pattern.permute.xlu0 0
    %34 = vperm.xlu0 %33, %v29
    %v35 = vpop.permute.xlu0 %34
    %36 = vset.pattern.permute.xlu0 0
    %37 = vperm.xlu0 %36, %v30
    %v38 = vpop.permute.xlu0 %37
    %vm39 = vcmp.eq.s32.totalorder %v32, %v35
    %vm40 = vcmp.eq.s32.totalorder %v32, %v38
    %v41 = vsel %vm39, 1, 0
    %v42 = vsel %vm40, 1, 0
    %v43 = vcvt.s32.f32 %v41
    %v44 = vcvt.s32.f32 %v42
    %v45 = vld [vmem:[#allocation2] sm:$0xff]
    %v46 = vld [vmem:[#allocation2 + $0x8] sm:$0xff]
    %v47 = vld [vmem:[#allocation2 + $0x10] sm:$0xff]
    %v48 = vld [vmem:[#allocation2 + $0x18] sm:$0xff]
    %v49 = vld [vmem:[#allocation2 + $0x20] sm:$0xff]
    %v50 = vld [vmem:[#allocation2 + $0x28] sm:$0xff]
    %v51 = vld [vmem:[#allocation2 + $0x30] sm:$0xff]
    %v52 = vld [vmem:[%s2] sm:$0x1]
    %v54 = vlaneseq
    %v55 = vshrl.u32 %v54, 7
    %v56 = vsub.s32 0, %v55
    %v57 = vrot.slane %v52, %v56
    %vm59 = vcmask 457728
    %v61 = vsel %vm59, %v43, 0
    %v64 = vsel %vm59, %v44, 0
    %66 = vmatprep.subr.mxu0 0.0
    %67 = vmatpush1.msra.mxu0 %v45
    %68 = vmatprep.subr.mxu0 0.0
    %69 = vmatpush1.msra.mxu0 %v46
    %70 = vmatprep.subr.mxu0 0.0
    %71 = vmatpush1.msra.mxu0 %v47
    %72 = vmatprep.subr.mxu0 0.0
    %73 = vmatpush1.msra.mxu0 %v48
    %74 = vmatprep.subr.mxu0 0.0
    %75 = vmatpush1.msra.mxu0 %v49
    %76 = vmatprep.subr.mxu0 0.0
    %77 = vmatpush1.msra.mxu0 %v50
    %78 = vmatprep.subr.mxu0 0.0
    %79 = vmatpush1.msra.mxu0 %v51
    %80 = vmatprep.subr.mxu0 0.0
    %81 = vmatpush1.msra.mxu0 0.0
    %82 = vmatprep.subr.mxu0 0.0
    %83 = vmatpush1.msra.mxu0 0.0
    %84 = vmatprep.subr.mxu0 0.0
    %85 = vmatpush1.msra.mxu0 0.0
    %86 = vmatprep.subr.mxu0 0.0
    %87 = vmatpush1.msra.mxu0 0.0
    %88 = vmatprep.subr.mxu0 0.0
    %89 = vmatpush1.msra.mxu0 0.0
    %90 = vmatprep.subr.mxu0 0.0
    %91 = vmatpush1.msra.mxu0 0.0
    %92 = vmatprep.subr.mxu0 0.0
    %93 = vmatpush1.msra.mxu0 0.0
    %94 = vmatprep.subr.mxu0 0.0
    %95 = vmatpush1.msra.mxu0 0.0
    %96 = vmatprep.subr.mxu0 0.0
    %97 = vmatpush1.msra.mxu0 0.0
    %98 = vmatprep.subr.mxu0 0.0
    %99 = vmatpush1.msra.mxu0 0.0
    %100 = vmatprep.subr.mxu0 0.0
    %101 = vmatpush1.msra.mxu0 0.0
    %102 = vmatprep.subr.mxu0 0.0
    %103 = vmatpush1.msra.mxu0 0.0
    %104 = vmatprep.subr.mxu0 0.0
    %105 = vmatpush1.msra.mxu0 0.0
    %106 = vmatprep.subr.mxu0 0.0
    %107 = vmatpush1.msra.mxu0 0.0
    %108 = vmatprep.subr.mxu0 0.0
    %109 = vmatpush1.msra.mxu0 0.0
    %110 = vmatprep.subr.mxu0 0.0
    %111 = vmatpush1.msra.mxu0 0.0
    %112 = vmatprep.subr.mxu0 0.0
    %113 = vmatpush1.msra.mxu0 0.0
    %114 = vmatprep.subr.mxu0 0.0
    %115 = vmatpush1.msra.mxu0 0.0
    %116 = vmatprep.subr.mxu0 0.0
    %117 = vmatpush1.msra.mxu0 0.0
    %118 = vmatprep.subr.mxu0 0.0
    %119 = vmatpush1.msra.mxu0 0.0
    %120 = vmatprep.subr.mxu0 0.0
    %121 = vmatpush1.msra.mxu0 0.0
    %122 = vmatprep.subr.mxu0 0.0
    %123 = vmatpush1.msra.mxu0 0.0
    %124 = vmatprep.subr.mxu0 0.0
    %125 = vmatpush1.msra.mxu0 0.0
    %126 = vmatprep.subr.mxu0 0.0
    %127 = vmatpush1.msra.mxu0 0.0
    %128 = vmatprep.subr.mxu0 0.0
    %129 = vmatpush1.msra.mxu0 0.0
    %130 = vmatprep.mubr.f32.mxu0 0.0
    %131 = vmatmul.mubr.f32.gmra.mrb[0].mxu0 %v61
    %v132 = vpop.f32.mrb[0].mxu0
    %v133 = vadd.f32 %v57, %v132
    %v134 = vpop.f32.mrb[0].mxu0
    %135 = vmatprep.mubr.f32.mxu0 0.0
    %136 = vmatmul.mubr.f32.gmra.mrb[0].mxu0 %v64
    %v137 = vpop.f32.mrb[0].mxu0
    %v138 = vadd.f32 %v57, %v137
    %v139 = vpop.f32.mrb[0].mxu0
    %140 = vdwg.mxu0
    %v141 = vmax.f32 %v133, 0.0
    %v142 = vmax.f32 %v138, 0.0
    %vm143 = vcmask 523264
    %144 = vst.msk [vmem:[#allocation5] sm:$0xff] %vm143, %v141
    %145 = vst.msk [vmem:[#allocation5 + $0x8] sm:$0xff] %vm143, %v142
    // Predicated region
    $region18: #{tpu_custom_call.1} parent=1 // pred_check
      _
    $region19: #{tpu_custom_call.1} parent=1 // pred_check_branch
      %147 = sbr.rel (0) target = $region21
    $region20: #{tpu_custom_call.1} parent=1 // pred_region
      %s149 = ssub.s32 256, 256
      %150 = vsyncadd [#allocation4], %s149
      %s151 = sshll.u32 [#allocation5], 4
      %s152 = int_to_ptr.vmem [resolvable:$true] %s151
      %157 = dma.vmem_to_hbm [thread:$0]  %s152, 256, %s3, [#allocation4], 128, 128, 8
    $region21: #{tpu_custom_call.1} parent=1 // pred_fallthru
      _
    // Predicated region
    $region22: #{tpu_custom_call.1} parent=1 // pred_check
      _
    $region23: #{tpu_custom_call.1} parent=1 // pred_check_branch
      %159 = sbr.rel (0) target = $region25
    $region24: #{tpu_custom_call.1} parent=1 // pred_region
      %160 = dma.done [#allocation4], 256
    $region25: #{tpu_custom_call.1} parent=1 // pred_fallthru
      _
    %161 = vsyncpa [#allocation3], 1
    %162 = vsyncpa [#allocation4], 1

</llo_original>
